<compile_context>
chip_gen: v6e
topology: v6e:2x2x1
jax: 0.10.0
libtpu: 0.0.40
codegen_flags: <defaults>
</compile_context>

<pallas_src>
import functools
import math

import jax
import jax.numpy as jnp
from jax import lax
from jax.experimental import pallas as pl
from jax.experimental.pallas import tpu as pltpu

_NEG_FILL = -1e30   # finite "-inf": exp() underflows to 0, avoids inf-inf NaNs
_LANE = 128


def _round_up(x, m):
    return (x + m - 1) // m * m


def _choose_row_tile(n_pad, itemsize):
    """Largest row tile dividing n_pad whose working set fits the VMEM budget."""
    budget = 32 * 1024 * 1024  # sized for the smallest chip (v7x: 64 MiB phys)
    for tm in (1024, 512, 256, 128):
        if n_pad % tm:
            continue
        # 2 pipeline buffers of the input block + ~4 f32 tile-sized temporaries.
        approx = tm * n_pad * (2 * itemsize + 4 * 4)
        if approx <= budget:
            return tm
    # TODO(synk): for very large N a 2-D (row, col-chunk) grid with partial
    # row-LSE accumulation would be needed; row tiles of the full width are
    # kept here for simplicity.
    return _LANE


def _mms_loss_kernel(s_ref, out_ref, colmax_ref, colsum_ref, acc_ref, *,
                     margin, n_valid, tile_m, n_pad):
    i = pl.program_id(0)
    n_steps = pl.num_programs(0)

    @pl.when(i == 0)
    def _init():
        colmax_ref[...] = jnp.full_like(colmax_ref, _NEG_FILL)
        colsum_ref[...] = jnp.zeros_like(colsum_ref)
        acc_ref[...] = jnp.zeros_like(acc_ref)

    s = s_ref[...].astype(jnp.float32)                  # (tile_m, n_pad)
    row_start = i * tile_m

    # Diagonal entries of this row block live at (r, row_start + r).
    row_ids = lax.broadcasted_iota(jnp.int32, (tile_m, n_pad), 0)
    col_ids = lax.broadcasted_iota(jnp.int32, (tile_m, n_pad), 1)
    diag_mask = col_ids == (row_ids + row_start)

    # margin only shifts diagonal logits: exp(x - margin) = exp(x) * exp(-margin)
    w = jnp.where(diag_mask, jnp.float32(math.exp(-margin)), jnp.float32(1.0))

    # Raw diagonal value per row of this block, shape (tile_m, 1).
    diag_raw = jnp.sum(jnp.where(diag_mask, s, 0.0), axis=1, keepdims=True)
    diag = diag_raw - jnp.float32(margin)

    # ---- rows: log-sum-exp with margin folded in (I2C direction) ----
    row_m = jnp.max(s, axis=1, keepdims=True)           # raw max is a valid shift
    row_se = jnp.sum(jnp.exp(s - row_m) * w, axis=1, keepdims=True)
    row_lse = row_m + jnp.log(row_se)

    r_ids = row_start + lax.broadcasted_iota(jnp.int32, (tile_m, 1), 0)
    r_valid = r_ids < n_valid
    # per-row contribution: (row_lse - diag) for I2C plus (-diag) for C2I
    contrib = jnp.where(r_valid, row_lse - 2.0 * diag, 0.0)
    acc_ref[...] += jnp.sum(contrib, axis=0, keepdims=True)

    # ---- columns: online (flash-style) max / sum-exp accumulation ----
    tile_cmax = jnp.max(s, axis=0, keepdims=True)        # (1, n_pad)
    new_cmax = jnp.maximum(colmax_ref[...], tile_cmax)
    tile_csum = jnp.sum(jnp.exp(s - new_cmax) * w, axis=0, keepdims=True)
    colsum_ref[...] = (colsum_ref[...] * jnp.exp(colmax_ref[...] - new_cmax)
                       + tile_csum)
    colmax_ref[...] = new_cmax

    @pl.when(i == n_steps - 1)
    def _finalize():
        col_lse = colmax_ref[...] + jnp.log(colsum_ref[...])    # (1, n_pad)
        c_valid = lax.broadcasted_iota(jnp.int32, (1, n_pad), 1) < n_valid
        col_sum = jnp.sum(jnp.where(c_valid, col_lse, 0.0), axis=1,
                          keepdims=True)
        total = acc_ref[...] + col_sum                          # (1, 1)
        out_ref[...] = total * jnp.float32(1.0 / n_valid)


def mms_loss(S, margin=0.001):
    """Pallas TPU implementation of MMS_loss.forward(S, margin)."""
    n = S.shape[0]
    assert S.shape == (n, n), "MMS loss expects a square similarity matrix"

    n_pad = _round_up(n, _LANE)
    tile_m = _choose_row_tile(n_pad, jnp.dtype(S.dtype).itemsize)
    if n_pad != n:
        S = jnp.pad(S, ((0, n_pad - n), (0, n_pad - n)),
                    constant_values=_NEG_FILL)

    kernel = functools.partial(_mms_loss_kernel, margin=float(margin),
                               n_valid=n, tile_m=tile_m, n_pad=n_pad)
    out = pl.pallas_call(
        kernel,
        out_shape=jax.ShapeDtypeStruct((1, 1), jnp.float32),
        grid_spec=pltpu.PrefetchScalarGridSpec(
            num_scalar_prefetch=0,
            grid=(n_pad // tile_m,),
            in_specs=[pl.BlockSpec((tile_m, n_pad), lambda i: (i, 0))],
            out_specs=pl.BlockSpec((1, 1), lambda i: (0, 0)),
            scratch_shapes=[
                pltpu.VMEM((1, n_pad), jnp.float32),   # running column max
                pltpu.VMEM((1, n_pad), jnp.float32),   # running column sum-exp
                pltpu.VMEM((1, 1), jnp.float32),       # row-side loss accumulator
            ]),
        compiler_params=pltpu.CompilerParams(
            dimension_semantics=("arbitrary",),        # sequential reduction axis
            vmem_limit_bytes=48 * 1024 * 1024),
    )(S)
    return out[0, 0]


def mms_loss_ref(S, margin=0.001):
    """Pure-JAX reference (mirrors the PyTorch forward)."""
    n = S.shape[0]
    Sf = S.astype(jnp.float32) - margin * jnp.eye(n, dtype=jnp.float32)
    tgt = jnp.arange(n)
    logp_r = jax.nn.log_softmax(Sf, axis=1)
    logp_c = jax.nn.log_softmax(Sf.T, axis=1)
    return -jnp.mean(logp_r[tgt, tgt]) - jnp.mean(logp_c[tgt, tgt])


if __name__ == "__main__":
    key = jax.random.PRNGKey(0)
    k1, k2 = jax.random.split(key)

    # Small case: batch of 8 -> S is [8, 8]; exercises column/row padding.
    S_small = jax.random.normal(k1, (8, 8), dtype=jnp.float32)
    loss_small = jax.block_until_ready(mms_loss(S_small, margin=0.001))
    ref_small = jax.block_until_ready(mms_loss_ref(S_small, margin=0.001))
    assert jnp.allclose(loss_small, ref_small, atol=1e-5, rtol=1e-5), (
        loss_small, ref_small)

    # Multi-tile case: 384 rows -> 3 row tiles of 128; exercises the online
    # column-statistics accumulation across grid steps.
    S_big = 4.0 * jax.random.normal(k2, (384, 384), dtype=jnp.float32)
    loss_big = jax.block_until_ready(mms_loss(S_big, margin=0.001))
    ref_big = jax.block_until_ready(mms_loss_ref(S_big, margin=0.001))
    assert jnp.allclose(loss_big, ref_big, atol=1e-3, rtol=1e-5), (
        loss_big, ref_big)

    print("KERNEL_OK")
</pallas_src>

<mosaic_0001>
module attributes {stable_mosaic.version = 11 : i64} {
  func.func @_mms_loss_kernel(%arg0: i32, %arg1: memref<128x128xf32, #tpu.memory_space<vmem>>, %arg2: memref<1x1xf32, #tpu.memory_space<vmem>>, %arg3: memref<1x128xf32, #tpu.memory_space<vmem>>, %arg4: memref<1x128xf32, #tpu.memory_space<vmem>>, %arg5: memref<1x1xf32, #tpu.memory_space<vmem>>) attributes {dimension_semantics = [#tpu.dimension_semantics<arbitrary>], iteration_bounds = array<i64: 1>, scalar_prefetch = 0 : i64, scratch_operands = 3 : i64, tpu.core_type = #tpu.core_type<tc>, window_params = [{transform_indices = @transform_0, window_bounds = array<i64: 128, 128>}, {pipeline_mode = #tpu.pipeline_mode<synchronous>, transform_indices = @transform_1, window_bounds = array<i64: 1, 1>}]} {
    %c0_i32 = arith.constant 0 : i32
    %0 = arith.cmpi eq, %arg0, %c0_i32 : i32
    %1 = arith.extui %0 : i1 to i32
    %c0_i32_0 = arith.constant 0 : i32
    %2 = arith.cmpi ne, %1, %c0_i32_0 : i32
    scf.if %2 {
      %cst_29 = arith.constant -1.000000e+30 : f32
      %65 = vector.broadcast %cst_29 : f32 to vector<1x128xf32>
      %c0_30 = arith.constant 0 : index
      %c0_31 = arith.constant 0 : index
      %66 = vector.load %arg3[%c0_30, %c0_31] : memref<1x128xf32, #tpu.memory_space<vmem>>, vector<1x128xf32>
      tpu.vector_store %arg3[%c0_30, %c0_31], %65 {strides = array<i32>} : memref<1x128xf32, #tpu.memory_space<vmem>>, vector<1x128xf32>,
      %cst_32 = arith.constant 0.000000e+00 : f32
      %67 = vector.broadcast %cst_32 : f32 to vector<1x128xf32>
      %c0_33 = arith.constant 0 : index
      %c0_34 = arith.constant 0 : index
      %68 = vector.load %arg4[%c0_33, %c0_34] : memref<1x128xf32, #tpu.memory_space<vmem>>, vector<1x128xf32>
      tpu.vector_store %arg4[%c0_33, %c0_34], %67 {strides = array<i32>} : memref<1x128xf32, #tpu.memory_space<vmem>>, vector<1x128xf32>,
      %cst_35 = arith.constant 0.000000e+00 : f32
      %69 = vector.broadcast %cst_35 : f32 to vector<1x1xf32>
      %c0_36 = arith.constant 0 : index
      %c0_37 = arith.constant 0 : index
      %70 = vector.load %arg5[%c0_36, %c0_37] : memref<1x1xf32, #tpu.memory_space<vmem>>, vector<1x1xf32>
      tpu.vector_store %arg5[%c0_36, %c0_37], %69 {strides = array<i32>} : memref<1x1xf32, #tpu.memory_space<vmem>>, vector<1x1xf32>,
    } else {
    }
    %c0 = arith.constant 0 : index
    %c0_1 = arith.constant 0 : index
    %3 = vector.load %arg1[%c0, %c0_1] : memref<128x128xf32, #tpu.memory_space<vmem>>, vector<128x128xf32>
    %c128_i32 = arith.constant 128 : i32
    %4 = arith.muli %arg0, %c128_i32 : i32
    %5 = tpu.iota {dimensions = array<i32: 0>} : vector<128x128xi32>
    %6 = tpu.iota {dimensions = array<i32: 1>} : vector<128x128xi32>
    %7 = vector.broadcast %4 : i32 to vector<128x128xi32>
    %8 = arith.addi %5, %7 : vector<128x128xi32>
    %9 = arith.cmpi eq, %6, %8 : vector<128x128xi32>
    %cst = arith.constant 0.999000489 : f32
    %cst_2 = arith.constant 1.000000e+00 : f32
    %10 = vector.broadcast %cst : f32 to vector<128x128xf32>
    %11 = vector.broadcast %cst_2 : f32 to vector<128x128xf32>
    %12 = arith.select %9, %10, %11 : vector<128x128xi1>, vector<128x128xf32>
    %cst_3 = arith.constant 0.000000e+00 : f32
    %13 = vector.broadcast %cst_3 : f32 to vector<128x128xf32>
    %14 = arith.select %9, %3, %13 : vector<128x128xi1>, vector<128x128xf32>
    %cst_4 = arith.constant dense<0.000000e+00> : vector<128xf32>
    %15 = vector.multi_reduction <add>, %14, %cst_4 [1] : vector<128x128xf32> to vector<128xf32>
    %16 = vector.shape_cast %15 : vector<128xf32> to vector<128x1xf32>
    %cst_5 = arith.constant 1.000000e-03 : f32
    %17 = vector.broadcast %cst_5 : f32 to vector<128x1xf32>
    %18 = arith.subf %16, %17 : vector<128x1xf32>
    %cst_6 = arith.constant dense<0xFF800000> : vector<128xf32>
    %19 = vector.multi_reduction <maximumf>, %3, %cst_6 [1] : vector<128x128xf32> to vector<128xf32>
    %20 = vector.shape_cast %19 : vector<128xf32> to vector<128x1xf32>
    %21 = vector.broadcast %20 : vector<128x1xf32> to vector<128x128xf32>
    %22 = arith.subf %3, %21 : vector<128x128xf32>
    %23 = math.exp %22 : vector<128x128xf32>
    %24 = arith.mulf %23, %12 : vector<128x128xf32>
    %cst_7 = arith.constant dense<0.000000e+00> : vector<128xf32>
    %25 = vector.multi_reduction <add>, %24, %cst_7 [1] : vector<128x128xf32> to vector<128xf32>
    %26 = vector.shape_cast %25 : vector<128xf32> to vector<128x1xf32>
    %27 = math.log %26 : vector<128x1xf32>
    %28 = arith.addf %20, %27 : vector<128x1xf32>
    %29 = tpu.iota {dimensions = array<i32: 0>} : vector<128x1xi32>
    %30 = vector.broadcast %4 : i32 to vector<128x1xi32>
    %31 = arith.addi %30, %29 : vector<128x1xi32>
    %c8_i32 = arith.constant 8 : i32
    %32 = vector.broadcast %c8_i32 : i32 to vector<128x1xi32>
    %33 = arith.cmpi slt, %31, %32 : vector<128x1xi32>
    %cst_8 = arith.constant 2.000000e+00 : f32
    %34 = vector.broadcast %cst_8 : f32 to vector<128x1xf32>
    %35 = arith.mulf %34, %18 : vector<128x1xf32>
    %36 = arith.subf %28, %35 : vector<128x1xf32>
    %cst_9 = arith.constant 0.000000e+00 : f32
    %37 = vector.broadcast %cst_9 : f32 to vector<128x1xf32>
    %38 = arith.select %33, %36, %37 : vector<128x1xi1>, vector<128x1xf32>
    %c0_10 = arith.constant 0 : index
    %c0_11 = arith.constant 0 : index
    %39 = vector.load %arg5[%c0_10, %c0_11] : memref<1x1xf32, #tpu.memory_space<vmem>>, vector<1x1xf32>
    %cst_12 = arith.constant dense<0.000000e+00> : vector<1xf32>
    %40 = vector.multi_reduction <add>, %38, %cst_12 [0] : vector<128x1xf32> to vector<1xf32>
    %41 = vector.shape_cast %40 : vector<1xf32> to vector<1x1xf32>
    %42 = arith.addf %39, %41 : vector<1x1xf32>
    %c0_13 = arith.constant 0 : index
    %c0_14 = arith.constant 0 : index
    %43 = vector.load %arg5[%c0_13, %c0_14] : memref<1x1xf32, #tpu.memory_space<vmem>>, vector<1x1xf32>
    tpu.vector_store %arg5[%c0_13, %c0_14], %42 {strides = array<i32>} : memref<1x1xf32, #tpu.memory_space<vmem>>, vector<1x1xf32>,
    %cst_15 = arith.constant dense<0xFF800000> : vector<128xf32>
    %44 = vector.multi_reduction <maximumf>, %3, %cst_15 [0] : vector<128x128xf32> to vector<128xf32>
    %45 = vector.shape_cast %44 : vector<128xf32> to vector<1x128xf32>
    %c0_16 = arith.constant 0 : index
    %c0_17 = arith.constant 0 : index
    %46 = vector.load %arg3[%c0_16, %c0_17] : memref<1x128xf32, #tpu.memory_space<vmem>>, vector<1x128xf32>
    %47 = arith.maximumf %46, %45 : vector<1x128xf32>
    %48 = vector.broadcast %47 : vector<1x128xf32> to vector<128x128xf32>
    %49 = arith.subf %3, %48 : vector<128x128xf32>
    %50 = math.exp %49 : vector<128x128xf32>
    %51 = arith.mulf %50, %12 : vector<128x128xf32>
    %cst_18 = arith.constant dense<0.000000e+00> : vector<128xf32>
    %52 = vector.multi_reduction <add>, %51, %cst_18 [0] : vector<128x128xf32> to vector<128xf32>
    %53 = vector.shape_cast %52 : vector<128xf32> to vector<1x128xf32>
    %c0_19 = arith.constant 0 : index
    %c0_20 = arith.constant 0 : index
    %54 = vector.load %arg4[%c0_19, %c0_20] : memref<1x128xf32, #tpu.memory_space<vmem>>, vector<1x128xf32>
    %c0_21 = arith.constant 0 : index
    %c0_22 = arith.constant 0 : index
    %55 = vector.load %arg3[%c0_21, %c0_22] : memref<1x128xf32, #tpu.memory_space<vmem>>, vector<1x128xf32>
    %56 = arith.subf %55, %47 : vector<1x128xf32>
    %57 = math.exp %56 : vector<1x128xf32>
    %58 = arith.mulf %54, %57 : vector<1x128xf32>
    %59 = arith.addf %58, %53 : vector<1x128xf32>
    %c0_23 = arith.constant 0 : index
    %c0_24 = arith.constant 0 : index
    %60 = vector.load %arg4[%c0_23, %c0_24] : memref<1x128xf32, #tpu.memory_space<vmem>>, vector<1x128xf32>
    tpu.vector_store %arg4[%c0_23, %c0_24], %59 {strides = array<i32>} : memref<1x128xf32, #tpu.memory_space<vmem>>, vector<1x128xf32>,
    %c0_25 = arith.constant 0 : index
    %c0_26 = arith.constant 0 : index
    %61 = vector.load %arg3[%c0_25, %c0_26] : memref<1x128xf32, #tpu.memory_space<vmem>>, vector<1x128xf32>
    tpu.vector_store %arg3[%c0_25, %c0_26], %47 {strides = array<i32>} : memref<1x128xf32, #tpu.memory_space<vmem>>, vector<1x128xf32>,
    %c0_i32_27 = arith.constant 0 : i32
    %62 = arith.cmpi eq, %arg0, %c0_i32_27 : i32
    %63 = arith.extui %62 : i1 to i32
    %c0_i32_28 = arith.constant 0 : i32
    %64 = arith.cmpi ne, %63, %c0_i32_28 : i32
    scf.if %64 {
      %c0_29 = arith.constant 0 : index
      %c0_30 = arith.constant 0 : index
      %65 = vector.load %arg3[%c0_29, %c0_30] : memref<1x128xf32, #tpu.memory_space<vmem>>, vector<1x128xf32>
      %c0_31 = arith.constant 0 : index
      %c0_32 = arith.constant 0 : index
      %66 = vector.load %arg4[%c0_31, %c0_32] : memref<1x128xf32, #tpu.memory_space<vmem>>, vector<1x128xf32>
      %67 = math.log %66 : vector<1x128xf32>
      %68 = arith.addf %65, %67 : vector<1x128xf32>
      %69 = tpu.iota {dimensions = array<i32: 1>} : vector<1x128xi32>
      %c8_i32_33 = arith.constant 8 : i32
      %70 = vector.broadcast %c8_i32_33 : i32 to vector<1x128xi32>
      %71 = arith.cmpi slt, %69, %70 : vector<1x128xi32>
      %cst_34 = arith.constant 0.000000e+00 : f32
      %72 = vector.broadcast %cst_34 : f32 to vector<1x128xf32>
      %73 = arith.select %71, %68, %72 : vector<1x128xi1>, vector<1x128xf32>
      %cst_35 = arith.constant dense<0.000000e+00> : vector<1xf32>
      %74 = vector.multi_reduction <add>, %73, %cst_35 [1] : vector<1x128xf32> to vector<1xf32>
      %75 = vector.shape_cast %74 : vector<1xf32> to vector<1x1xf32>
      %c0_36 = arith.constant 0 : index
      %c0_37 = arith.constant 0 : index
      %76 = vector.load %arg5[%c0_36, %c0_37] : memref<1x1xf32, #tpu.memory_space<vmem>>, vector<1x1xf32>
      %77 = arith.addf %76, %75 : vector<1x1xf32>
      %cst_38 = arith.constant 1.250000e-01 : f32
      %78 = vector.broadcast %cst_38 : f32 to vector<1x1xf32>
      %79 = arith.mulf %77, %78 : vector<1x1xf32>
      %c0_39 = arith.constant 0 : index
      %c0_40 = arith.constant 0 : index
      %80 = vector.load %arg2[%c0_39, %c0_40] : memref<1x1xf32, #tpu.memory_space<vmem>>, vector<1x1xf32>
      tpu.vector_store %arg2[%c0_39, %c0_40], %79 {strides = array<i32>} : memref<1x1xf32, #tpu.memory_space<vmem>>, vector<1x1xf32>,
    } else {
    }
    return
  }
  func.func @transform_0(%arg0: i32) -> (i32, i32) {
    %c0_i32 = arith.constant 0 : i32
    %c0_i32_0 = arith.constant 0 : i32
    return %arg0, %c0_i32 : i32, i32
  }
  func.func @transform_1(%arg0: i32) -> (i32, i32) {
    %c0_i32 = arith.constant 0 : i32
    %c0_i32_0 = arith.constant 0 : i32
    %c0_i32_1 = arith.constant 0 : i32
    return %c0_i32, %c0_i32_0 : i32, i32
  }
}

</mosaic_0001>

<llo_original>
// kernel: tpu_custom_call.1
$region0: #{tpu_custom_call.1}
  #allocation0 [shape = 'u32[]', space=smem, size = 0x4, offset = 0x4, fixed_abs, tag = 'smem constant byte address 0x4 - core index']
  #allocation1 [shape = 'u32[144,128]{1,0:T(1,128)}', space=vmem, size = 0x12000, scoped, tag = 'internal scratch']
  #allocation2 [shape = 'f32[1,128]{1,0:T(1,128)}', space=vmem, size = 0x200, scoped, tag = 'scratch operand']
  #allocation3 [shape = 'f32[1,128]{1,0:T(1,128)}', space=vmem, size = 0x200, scoped, tag = 'scratch operand']
  #allocation4 [shape = 'f32[1,1]{1,0:T(1,128)}', space=vmem, size = 0x200, scoped, tag = 'scratch operand']
  %s0 = inlined_call_operand.hbm [shape: f32[128,128], index: 0, kind: input, shape index: {}]
  %s1 = inlined_call_operand.hbm [shape: f32[1,1], index: 1, kind: output, shape index: {}]
  %s2 = sld [smem:[#allocation0]]
  $region26: #{tpu_custom_call.1} parent=0
    _
  %s4 = ssub.s32 1, %s2
  %s5 = scalar_select 0, %s4, %s2
  $region1: #{tpu_custom_call.1} parent=0
    #allocation5 [shape = 'u8[65536]{0}', space=vmem, size = 0x10000, scoped, tag = 'input window, operand 0, single buffered']
    #allocation6 [shape = 's32[1]{0}', space=sflag, size = 0x4, scoped, tag = 'scoped memory for tpu_custom_call.1']
    #allocation7 [shape = 's32[1]{0}', space=sflag, size = 0x4, scoped, tag = 'scoped memory for tpu_custom_call.1']
    #allocation8 [shape = 'u8[512]{0}', space=vmem, size = 0x400, scoped, tag = 'output window, operand 0, single buffered']
    %6 = vsyncpa [#allocation6], 0
    %7 = vsyncpa [#allocation7], 0
    // Predicated region
    $region2: #{tpu_custom_call.1} parent=1 // pred_check
      _
    $region3: #{tpu_custom_call.1} parent=1 // pred_check_branch
      %9 = sbr.rel (0) target = $region5
    $region4: #{tpu_custom_call.1} parent=1 // pred_region
      %s11 = ssub.s32 2048, 2048
      %12 = vsyncadd [#allocation6], %s11
      %s13 = sshll.u32 [#allocation5], 4
      %s14 = int_to_ptr.vmem [resolvable:$true] %s13
      %19 = dma.hbm_to_vmem [thread:$0]  %s0, 2048, %s14, [#allocation6], 128, 128, 8
    $region5: #{tpu_custom_call.1} parent=1 // pred_fallthru
      _
    // Predicated region
    $region6: #{tpu_custom_call.1} parent=1 // pred_check
      _
    $region7: #{tpu_custom_call.1} parent=1 // pred_check_branch
      %21 = sbr.rel (0) target = $region9
    $region8: #{tpu_custom_call.1} parent=1 // pred_region
      %22 = dma.done [#allocation6], 2048
    $region9: #{tpu_custom_call.1} parent=1 // pred_fallthru
      _
    %p23 = scmp.eq.s32.totalorder 0, 0
    // Predicated region
    $region10: #{tpu_custom_call.1} parent=1 // pred_check
      %p24 = pneg %p23
    $region11: #{tpu_custom_call.1} parent=1 // pred_check_branch
      %26 = sbr.rel (%p24) target = $region13
    $region12: #{tpu_custom_call.1} parent=1 // pred_region
      %27 = vst [vmem:[#allocation2] sm:$0x1] -1e+30
      %28 = vst [vmem:[#allocation3] sm:$0x1] 0.0
      %vm29 = vcmask 0
      %30 = vst.msk [vmem:[#allocation4] sm:$0x1] %vm29, 0.0
    $region13: #{tpu_custom_call.1} parent=1 // pred_fallthru
      _
    %v31 = vld [vmem:[#allocation5] sm:$0xff]
    %v32 = vld [vmem:[#allocation5 + $0x8] sm:$0xff]
    %v33 = vld [vmem:[#allocation5 + $0x10] sm:$0xff]
    %v34 = vld [vmem:[#allocation5 + $0x18] sm:$0xff]
    %v35 = vld [vmem:[#allocation5 + $0x20] sm:$0xff]
    %v36 = vld [vmem:[#allocation5 + $0x28] sm:$0xff]
    %v37 = vld [vmem:[#allocation5 + $0x30] sm:$0xff]
    %v38 = vld [vmem:[#allocation5 + $0x38] sm:$0xff]
    %v39 = vld [vmem:[#allocation5 + $0x40] sm:$0xff]
    %v40 = vld [vmem:[#allocation5 + $0x48] sm:$0xff]
    %v41 = vld [vmem:[#allocation5 + $0x50] sm:$0xff]
    %v42 = vld [vmem:[#allocation5 + $0x58] sm:$0xff]
    %v43 = vld [vmem:[#allocation5 + $0x60] sm:$0xff]
    %v44 = vld [vmem:[#allocation5 + $0x68] sm:$0xff]
    %v45 = vld [vmem:[#allocation5 + $0x70] sm:$0xff]
    %v46 = vld [vmem:[#allocation5 + $0x78] sm:$0xff]
    %s47 = smul.u32 0, 128
    %v48 = vlaneseq
    %v49 = vshrl.u32 %v48, 7
    %v50 = vadd.s32 %v49, 8
    %v51 = vadd.s32 %v49, 16
    %v52 = vadd.s32 %v49, 24
    %v53 = vadd.s32 %v49, 32
    %v54 = vadd.s32 %v49, 40
    %v55 = vadd.s32 %v49, 48
    %v56 = vadd.s32 %v49, 56
    %v57 = vadd.s32 %v49, 64
    %v58 = vadd.s32 %v49, 72
    %v59 = vadd.s32 %v49, 80
    %v60 = vadd.s32 %v49, 88
    %v61 = vadd.s32 %v49, 96
    %v62 = vadd.s32 %v49, 104
    %v63 = vadd.s32 %v49, 112
    %v64 = vadd.s32 %v49, 120
    %v65 = vlaneseq
    %v66 = vand.u32 %v65, 127
    %v67 = vstv %s47
    %v68 = vadd.s32 %v49, %v67
    %v69 = vadd.s32 %v50, %v67
    %v70 = vadd.s32 %v51, %v67
    %v71 = vadd.s32 %v52, %v67
    %v72 = vadd.s32 %v53, %v67
    %v73 = vadd.s32 %v54, %v67
    %v74 = vadd.s32 %v55, %v67
    %v75 = vadd.s32 %v56, %v67
    %v76 = vadd.s32 %v57, %v67
    %v77 = vadd.s32 %v58, %v67
    %v78 = vadd.s32 %v59, %v67
    %v79 = vadd.s32 %v60, %v67
    %v80 = vadd.s32 %v61, %v67
    %v81 = vadd.s32 %v62, %v67
    %v82 = vadd.s32 %v63, %v67
    %v83 = vadd.s32 %v64, %v67
    %vm84 = vcmp.eq.s32.totalorder %v66, %v68
    %vm85 = vcmp.eq.s32.totalorder %v66, %v69
    %vm86 = vcmp.eq.s32.totalorder %v66, %v70
    %vm87 = vcmp.eq.s32.totalorder %v66, %v71
    %vm88 = vcmp.eq.s32.totalorder %v66, %v72
    %vm89 = vcmp.eq.s32.totalorder %v66, %v73
    %vm90 = vcmp.eq.s32.totalorder %v66, %v74
    %vm91 = vcmp.eq.s32.totalorder %v66, %v75
    %vm92 = vcmp.eq.s32.totalorder %v66, %v76
    %vm93 = vcmp.eq.s32.totalorder %v66, %v77
    %vm94 = vcmp.eq.s32.totalorder %v66, %v78
    %vm95 = vcmp.eq.s32.totalorder %v66, %v79
    %vm96 = vcmp.eq.s32.totalorder %v66, %v80
    %vm97 = vcmp.eq.s32.totalorder %v66, %v81
    %vm98 = vcmp.eq.s32.totalorder %v66, %v82
    %vm99 = vcmp.eq.s32.totalorder %v66, %v83
    %v100 = vsel %vm84, 0.9990005, 1.0
    %v101 = vsel %vm85, 0.9990005, 1.0
    %v102 = vsel %vm86, 0.9990005, 1.0
    %v103 = vsel %vm87, 0.9990005, 1.0
    %v104 = vsel %vm88, 0.9990005, 1.0
    %v105 = vsel %vm89, 0.9990005, 1.0
    %v106 = vsel %vm90, 0.9990005, 1.0
    %v107 = vsel %vm91, 0.9990005, 1.0
    %v108 = vsel %vm92, 0.9990005, 1.0
    %v109 = vsel %vm93, 0.9990005, 1.0
    %v110 = vsel %vm94, 0.9990005, 1.0
    %v111 = vsel %vm95, 0.9990005, 1.0
    %v112 = vsel %vm96, 0.9990005, 1.0
    %v113 = vsel %vm97, 0.9990005, 1.0
    %v114 = vsel %vm98, 0.9990005, 1.0
    %v115 = vsel %vm99, 0.9990005, 1.0
    %v116 = vsel %vm84, %v31, 0.0
    %v117 = vsel %vm85, %v32, 0.0
    %v118 = vsel %vm86, %v33, 0.0
    %v119 = vsel %vm87, %v34, 0.0
    %v120 = vsel %vm88, %v35, 0.0
    %v121 = vsel %vm89, %v36, 0.0
    %v122 = vsel %vm90, %v37, 0.0
    %v123 = vsel %vm91, %v38, 0.0
    %v124 = vsel %vm92, %v39, 0.0
    %v125 = vsel %vm93, %v40, 0.0
    %v126 = vsel %vm94, %v41, 0.0
    %v127 = vsel %vm95, %v42, 0.0
    %v128 = vsel %vm96, %v43, 0.0
    %v129 = vsel %vm97, %v44, 0.0
    %v130 = vsel %vm98, %v45, 0.0
    %v131 = vsel %vm99, %v46, 0.0
    %132 = vadd.xlane.f32.xlu0 %v116
    %v133 = vpop.xlane.xlu0 %132
    %134 = vadd.xlane.f32.xlu0 %v117
    %v135 = vpop.xlane.xlu0 %134
    %136 = vadd.xlane.f32.xlu0 %v118
    %v137 = vpop.xlane.xlu0 %136
    %138 = vadd.xlane.f32.xlu0 %v119
    %v139 = vpop.xlane.xlu0 %138
    %140 = vadd.xlane.f32.xlu0 %v120
    %v141 = vpop.xlane.xlu0 %140
    %142 = vadd.xlane.f32.xlu0 %v121
    %v143 = vpop.xlane.xlu0 %142
    %144 = vadd.xlane.f32.xlu0 %v122
    %v145 = vpop.xlane.xlu0 %144
    %146 = vadd.xlane.f32.xlu0 %v123
    %v147 = vpop.xlane.xlu0 %146
    %148 = vadd.xlane.f32.xlu0 %v124
    %v149 = vpop.xlane.xlu0 %148
    %150 = vadd.xlane.f32.xlu0 %v125
    %v151 = vpop.xlane.xlu0 %150
    %152 = vadd.xlane.f32.xlu0 %v126
    %v153 = vpop.xlane.xlu0 %152
    %154 = vadd.xlane.f32.xlu0 %v127
    %v155 = vpop.xlane.xlu0 %154
    %156 = vadd.xlane.f32.xlu0 %v128
    %v157 = vpop.xlane.xlu0 %156
    %158 = vadd.xlane.f32.xlu0 %v129
    %v159 = vpop.xlane.xlu0 %158
    %160 = vadd.xlane.f32.xlu0 %v130
    %v161 = vpop.xlane.xlu0 %160
    %162 = vadd.xlane.f32.xlu0 %v131
    %v163 = vpop.xlane.xlu0 %162
    %v164 = vsub.f32 %v133, 0.001
    %v165 = vsub.f32 %v135, 0.001
    %v166 = vsub.f32 %v137, 0.001
    %v167 = vsub.f32 %v139, 0.001
    %v168 = vsub.f32 %v141, 0.001
    %v169 = vsub.f32 %v143, 0.001
    %v170 = vsub.f32 %v145, 0.001
    %v171 = vsub.f32 %v147, 0.001
    %v172 = vsub.f32 %v149, 0.001
    %v173 = vsub.f32 %v151, 0.001
    %v174 = vsub.f32 %v153, 0.001
    %v175 = vsub.f32 %v155, 0.001
    %v176 = vsub.f32 %v157, 0.001
    %v177 = vsub.f32 %v159, 0.001
    %v178 = vsub.f32 %v161, 0.001
    %v179 = vsub.f32 %v163, 0.001
    %180 = vmax.xlane.f32.xlu0 %v31
    %v181 = vpop.xlane.xlu0 %180
    %182 = vmax.xlane.f32.xlu0 %v32
    %v183 = vpop.xlane.xlu0 %182
    %184 = vmax.xlane.f32.xlu0 %v33
    %v185 = vpop.xlane.xlu0 %184
    %186 = vmax.xlane.f32.xlu0 %v34
    %v187 = vpop.xlane.xlu0 %186
    %188 = vmax.xlane.f32.xlu0 %v35
    %v189 = vpop.xlane.xlu0 %188
    %190 = vmax.xlane.f32.xlu0 %v36
    %v191 = vpop.xlane.xlu0 %190
    %192 = vmax.xlane.f32.xlu0 %v37
    %v193 = vpop.xlane.xlu0 %192
    %194 = vmax.xlane.f32.xlu0 %v38
    %v195 = vpop.xlane.xlu0 %194
    %196 = vmax.xlane.f32.xlu0 %v39
    %v197 = vpop.xlane.xlu0 %196
    %198 = vmax.xlane.f32.xlu0 %v40
    %v199 = vpop.xlane.xlu0 %198
    %200 = vmax.xlane.f32.xlu0 %v41
    %v201 = vpop.xlane.xlu0 %200
    %202 = vmax.xlane.f32.xlu0 %v42
    %v203 = vpop.xlane.xlu0 %202
    %204 = vmax.xlane.f32.xlu0 %v43
    %v205 = vpop.xlane.xlu0 %204
    %206 = vmax.xlane.f32.xlu0 %v44
    %v207 = vpop.xlane.xlu0 %206
    %208 = vmax.xlane.f32.xlu0 %v45
    %v209 = vpop.xlane.xlu0 %208
    %210 = vmax.xlane.f32.xlu0 %v46
    %v211 = vpop.xlane.xlu0 %210
    %v212 = vsub.f32 %v31, %v181
    %v213 = vsub.f32 %v32, %v183
    %v214 = vsub.f32 %v33, %v185
    %v215 = vsub.f32 %v34, %v187
    %v216 = vsub.f32 %v35, %v189
    %v217 = vsub.f32 %v36, %v191
    %v218 = vsub.f32 %v37, %v193
    %v219 = vsub.f32 %v38, %v195
    %v220 = vsub.f32 %v39, %v197
    %v221 = vsub.f32 %v40, %v199
    %v222 = vsub.f32 %v41, %v201
    %v223 = vsub.f32 %v42, %v203
    %v224 = vsub.f32 %v43, %v205
    %v225 = vsub.f32 %v44, %v207
    %v226 = vsub.f32 %v45, %v209
    %v227 = vsub.f32 %v46, %v211
    %v228 = vmul.f32 %v212, 1.442695
    %v229 = vpow.pop %v228
    %v230 = vmul.f32 %v213, 1.442695
    %v231 = vpow.pop %v230
    %v232 = vmul.f32 %v214, 1.442695
    %v233 = vpow.pop %v232
    %v234 = vmul.f32 %v215, 1.442695
    %v235 = vpow.pop %v234
    %v236 = vmul.f32 %v216, 1.442695
    %v237 = vpow.pop %v236
    %v238 = vmul.f32 %v217, 1.442695
    %v239 = vpow.pop %v238
    %v240 = vmul.f32 %v218, 1.442695
    %v241 = vpow.pop %v240
    %v242 = vmul.f32 %v219, 1.442695
    %v243 = vpow.pop %v242
    %v244 = vmul.f32 %v220, 1.442695
    %v245 = vpow.pop %v244
    %v246 = vmul.f32 %v221, 1.442695
    %v247 = vpow.pop %v246
    %v248 = vmul.f32 %v222, 1.442695
    %v249 = vpow.pop %v248
    %v250 = vmul.f32 %v223, 1.442695
    %v251 = vpow.pop %v250
    %v252 = vmul.f32 %v224, 1.442695
    %v253 = vpow.pop %v252
    %v254 = vmul.f32 %v225, 1.442695
    %v255 = vpow.pop %v254
    %v256 = vmul.f32 %v226, 1.442695
    %v257 = vpow.pop %v256
    %v258 = vmul.f32 %v227, 1.442695
    %v259 = vpow.pop %v258
    %v260 = vmul.f32 %v229, %v100
    %v261 = vmul.f32 %v231, %v101
    %v262 = vmul.f32 %v233, %v102
    %v263 = vmul.f32 %v235, %v103
    %v264 = vmul.f32 %v237, %v104
    %v265 = vmul.f32 %v239, %v105
    %v266 = vmul.f32 %v241, %v106
    %v267 = vmul.f32 %v243, %v107
    %v268 = vmul.f32 %v245, %v108
    %v269 = vmul.f32 %v247, %v109
    %v270 = vmul.f32 %v249, %v110
    %v271 = vmul.f32 %v251, %v111
    %v272 = vmul.f32 %v253, %v112
    %v273 = vmul.f32 %v255, %v113
    %v274 = vmul.f32 %v257, %v114
    %v275 = vmul.f32 %v259, %v115
    %276 = vadd.xlane.f32.xlu0 %v260
    %v277 = vpop.xlane.xlu0 %276
    %278 = vadd.xlane.f32.xlu0 %v261
    %v279 = vpop.xlane.xlu0 %278
    %280 = vadd.xlane.f32.xlu0 %v262
    %v281 = vpop.xlane.xlu0 %280
    %282 = vadd.xlane.f32.xlu0 %v263
    %v283 = vpop.xlane.xlu0 %282
    %284 = vadd.xlane.f32.xlu0 %v264
    %v285 = vpop.xlane.xlu0 %284
    %286 = vadd.xlane.f32.xlu0 %v265
    %v287 = vpop.xlane.xlu0 %286
    %288 = vadd.xlane.f32.xlu0 %v266
    %v289 = vpop.xlane.xlu0 %288
    %290 = vadd.xlane.f32.xlu0 %v267
    %v291 = vpop.xlane.xlu0 %290
    %292 = vadd.xlane.f32.xlu0 %v268
    %v293 = vpop.xlane.xlu0 %292
    %294 = vadd.xlane.f32.xlu0 %v269
    %v295 = vpop.xlane.xlu0 %294
    %296 = vadd.xlane.f32.xlu0 %v270
    %v297 = vpop.xlane.xlu0 %296
    %298 = vadd.xlane.f32.xlu0 %v271
    %v299 = vpop.xlane.xlu0 %298
    %300 = vadd.xlane.f32.xlu0 %v272
    %v301 = vpop.xlane.xlu0 %300
    %302 = vadd.xlane.f32.xlu0 %v273
    %v303 = vpop.xlane.xlu0 %302
    %304 = vadd.xlane.f32.xlu0 %v274
    %v305 = vpop.xlane.xlu0 %304
    %306 = vadd.xlane.f32.xlu0 %v275
    %v307 = vpop.xlane.xlu0 %306
    %v308 = vlog2.pop %v277
    %v309 = vmul.f32 %v308, 0.6931472
    %v310 = vlog2.pop %v279
    %v311 = vmul.f32 %v310, 0.6931472
    %v312 = vlog2.pop %v281
    %v313 = vmul.f32 %v312, 0.6931472
    %v314 = vlog2.pop %v283
    %v315 = vmul.f32 %v314, 0.6931472
    %v316 = vlog2.pop %v285
    %v317 = vmul.f32 %v316, 0.6931472
    %v318 = vlog2.pop %v287
    %v319 = vmul.f32 %v318, 0.6931472
    %v320 = vlog2.pop %v289
    %v321 = vmul.f32 %v320, 0.6931472
    %v322 = vlog2.pop %v291
    %v323 = vmul.f32 %v322, 0.6931472
    %v324 = vlog2.pop %v293
    %v325 = vmul.f32 %v324, 0.6931472
    %v326 = vlog2.pop %v295
    %v327 = vmul.f32 %v326, 0.6931472
    %v328 = vlog2.pop %v297
    %v329 = vmul.f32 %v328, 0.6931472
    %v330 = vlog2.pop %v299
    %v331 = vmul.f32 %v330, 0.6931472
    %v332 = vlog2.pop %v301
    %v333 = vmul.f32 %v332, 0.6931472
    %v334 = vlog2.pop %v303
    %v335 = vmul.f32 %v334, 0.6931472
    %v336 = vlog2.pop %v305
    %v337 = vmul.f32 %v336, 0.6931472
    %v338 = vlog2.pop %v307
    %v339 = vmul.f32 %v338, 0.6931472
    %v340 = vadd.f32 %v181, %v309
    %v341 = vadd.f32 %v183, %v311
    %v342 = vadd.f32 %v185, %v313
    %v343 = vadd.f32 %v187, %v315
    %v344 = vadd.f32 %v189, %v317
    %v345 = vadd.f32 %v191, %v319
    %v346 = vadd.f32 %v193, %v321
    %v347 = vadd.f32 %v195, %v323
    %v348 = vadd.f32 %v197, %v325
    %v349 = vadd.f32 %v199, %v327
    %v350 = vadd.f32 %v201, %v329
    %v351 = vadd.f32 %v203, %v331
    %v352 = vadd.f32 %v205, %v333
    %v353 = vadd.f32 %v207, %v335
    %v354 = vadd.f32 %v209, %v337
    %v355 = vadd.f32 %v211, %v339
    %vm356 = vcmp.lt.s32.totalorder %v68, 8
    %vm357 = vcmp.lt.s32.totalorder %v69, 8
    %vm358 = vcmp.lt.s32.totalorder %v70, 8
    %vm359 = vcmp.lt.s32.totalorder %v71, 8
    %vm360 = vcmp.lt.s32.totalorder %v72, 8
    %vm361 = vcmp.lt.s32.totalorder %v73, 8
    %vm362 = vcmp.lt.s32.totalorder %v74, 8
    %vm363 = vcmp.lt.s32.totalorder %v75, 8
    %vm364 = vcmp.lt.s32.totalorder %v76, 8
    %vm365 = vcmp.lt.s32.totalorder %v77, 8
    %vm366 = vcmp.lt.s32.totalorder %v78, 8
    %vm367 = vcmp.lt.s32.totalorder %v79, 8
    %vm368 = vcmp.lt.s32.totalorder %v80, 8
    %vm369 = vcmp.lt.s32.totalorder %v81, 8
    %vm370 = vcmp.lt.s32.totalorder %v82, 8
    %vm371 = vcmp.lt.s32.totalorder %v83, 8
    %v372 = vmul.f32 %v164, 2.0
    %v373 = vmul.f32 %v165, 2.0
    %v374 = vmul.f32 %v166, 2.0
    %v375 = vmul.f32 %v167, 2.0
    %v376 = vmul.f32 %v168, 2.0
    %v377 = vmul.f32 %v169, 2.0
    %v378 = vmul.f32 %v170, 2.0
    %v379 = vmul.f32 %v171, 2.0
    %v380 = vmul.f32 %v172, 2.0
    %v381 = vmul.f32 %v173, 2.0
    %v382 = vmul.f32 %v174, 2.0
    %v383 = vmul.f32 %v175, 2.0
    %v384 = vmul.f32 %v176, 2.0
    %v385 = vmul.f32 %v177, 2.0
    %v386 = vmul.f32 %v178, 2.0
    %v387 = vmul.f32 %v179, 2.0
    %v388 = vsub.f32 %v340, %v372
    %v389 = vsub.f32 %v341, %v373
    %v390 = vsub.f32 %v342, %v374
    %v391 = vsub.f32 %v343, %v375
    %v392 = vsub.f32 %v344, %v376
    %v393 = vsub.f32 %v345, %v377
    %v394 = vsub.f32 %v346, %v378
    %v395 = vsub.f32 %v347, %v379
    %v396 = vsub.f32 %v348, %v380
    %v397 = vsub.f32 %v349, %v381
    %v398 = vsub.f32 %v350, %v382
    %v399 = vsub.f32 %v351, %v383
    %v400 = vsub.f32 %v352, %v384
    %v401 = vsub.f32 %v353, %v385
    %v402 = vsub.f32 %v354, %v386
    %v403 = vsub.f32 %v355, %v387
    %v404 = vsel %vm356, %v388, 0.0
    %v405 = vsel %vm357, %v389, 0.0
    %v406 = vsel %vm358, %v390, 0.0
    %v407 = vsel %vm359, %v391, 0.0
    %v408 = vsel %vm360, %v392, 0.0
    %v409 = vsel %vm361, %v393, 0.0
    %v410 = vsel %vm362, %v394, 0.0
    %v411 = vsel %vm363, %v395, 0.0
    %v412 = vsel %vm364, %v396, 0.0
    %v413 = vsel %vm365, %v397, 0.0
    %v414 = vsel %vm366, %v398, 0.0
    %v415 = vsel %vm367, %v399, 0.0
    %v416 = vsel %vm368, %v400, 0.0
    %v417 = vsel %vm369, %v401, 0.0
    %v418 = vsel %vm370, %v402, 0.0
    %v419 = vsel %vm371, %v403, 0.0
    %v420 = vld [vmem:[#allocation4] sm:$0x1]
    %v421 = vadd.f32 %v404, %v405
    %v422 = vadd.f32 %v421, %v406
    %v423 = vadd.f32 %v422, %v407
    %v424 = vadd.f32 %v423, %v408
    %v425 = vadd.f32 %v424, %v409
    %v426 = vadd.f32 %v425, %v410
    %v427 = vadd.f32 %v426, %v411
    %v428 = vadd.f32 %v427, %v412
    %v429 = vadd.f32 %v428, %v413
    %v430 = vadd.f32 %v429, %v414
    %v431 = vadd.f32 %v430, %v415
    %v432 = vadd.f32 %v431, %v416
    %v433 = vadd.f32 %v432, %v417
    %v434 = vadd.f32 %v433, %v418
    %v435 = vadd.f32 %v434, %v419
    %v436 = vrot.slane %v435, 4
    %v437 = vadd.f32 %v435, %v436
    %v438 = vrot.slane %v437, 2
    %v439 = vadd.f32 %v437, %v438
    %v440 = vrot.slane %v439, 1
    %v441 = vadd.f32 %v439, %v440
    %v442 = vadd.f32 %v420, %v441
    %vm443 = vcmask 0
    %444 = vst.msk [vmem:[#allocation4] sm:$0x1] %vm443, %v442
    %v445 = vmax.f32 %v31, %v35
    %v446 = vmax.f32 %v32, %v36
    %v447 = vmax.f32 %v33, %v37
    %v448 = vmax.f32 %v34, %v38
    %v449 = vmax.f32 %v445, %v39
    %v450 = vmax.f32 %v446, %v40
    %v451 = vmax.f32 %v447, %v41
    %v452 = vmax.f32 %v448, %v42
    %v453 = vmax.f32 %v449, %v43
    %v454 = vmax.f32 %v450, %v44
    %v455 = vmax.f32 %v451, %v45
    %v456 = vmax.f32 %v452, %v46
    %v457 = vmax.f32 %v453, %v454
    %v458 = vmax.f32 %v455, %v456
    %v459 = vmax.f32 %v457, %v458
    %v460 = vrot.slane %v459, 4
    %v461 = vmax.f32 %v459, %v460
    %v462 = vrot.slane %v461, 2
    %v463 = vmax.f32 %v461, %v462
    %v464 = vrot.slane %v463, 1
    %v465 = vmax.f32 %v463, %v464
    %v466 = vld [vmem:[#allocation2] sm:$0x1]
    %v467 = vmax.f32 %v466, %v465
    %v469 = vlaneseq
    %v470 = vshrl.u32 %v469, 7
    %v471 = vsub.s32 0, %v470
    %v472 = vrot.slane %v467, %v471
    %v474 = vsub.f32 %v31, %v472
    %v475 = vsub.f32 %v32, %v472
    %v476 = vsub.f32 %v33, %v472
    %v477 = vsub.f32 %v34, %v472
    %v478 = vsub.f32 %v35, %v472
    %v479 = vsub.f32 %v36, %v472
    %v480 = vsub.f32 %v37, %v472
    %v481 = vsub.f32 %v38, %v472
    %v482 = vsub.f32 %v39, %v472
    %v483 = vsub.f32 %v40, %v472
    %v484 = vsub.f32 %v41, %v472
    %v485 = vsub.f32 %v42, %v472
    %v486 = vsub.f32 %v43, %v472
    %v487 = vsub.f32 %v44, %v472
    %v488 = vsub.f32 %v45, %v472
    %v489 = vsub.f32 %v46, %v472
    %v490 = vmul.f32 %v474, 1.442695
    %v491 = vpow.pop %v490
    %v492 = vmul.f32 %v475, 1.442695
    %v493 = vpow.pop %v492
    %v494 = vmul.f32 %v476, 1.442695
    %v495 = vpow.pop %v494
    %v496 = vmul.f32 %v477, 1.442695
    %v497 = vpow.pop %v496
    %v498 = vmul.f32 %v478, 1.442695
    %v499 = vpow.pop %v498
    %v500 = vmul.f32 %v479, 1.442695
    %v501 = vpow.pop %v500
    %v502 = vmul.f32 %v480, 1.442695
    %v503 = vpow.pop %v502
    %v504 = vmul.f32 %v481, 1.442695
    %v505 = vpow.pop %v504
    %v506 = vmul.f32 %v482, 1.442695
    %v507 = vpow.pop %v506
    %v508 = vmul.f32 %v483, 1.442695
    %v509 = vpow.pop %v508
    %v510 = vmul.f32 %v484, 1.442695
    %v511 = vpow.pop %v510
    %v512 = vmul.f32 %v485, 1.442695
    %v513 = vpow.pop %v512
    %v514 = vmul.f32 %v486, 1.442695
    %v515 = vpow.pop %v514
    %v516 = vmul.f32 %v487, 1.442695
    %v517 = vpow.pop %v516
    %v518 = vmul.f32 %v488, 1.442695
    %v519 = vpow.pop %v518
    %v520 = vmul.f32 %v489, 1.442695
    %v521 = vpow.pop %v520
    %v522 = vmul.f32 %v491, %v100
    %v523 = vmul.f32 %v493, %v101
    %v524 = vmul.f32 %v495, %v102
    %v525 = vmul.f32 %v497, %v103
    %v526 = vmul.f32 %v499, %v104
    %v527 = vmul.f32 %v501, %v105
    %v528 = vmul.f32 %v503, %v106
    %v529 = vmul.f32 %v505, %v107
    %v530 = vmul.f32 %v507, %v108
    %v531 = vmul.f32 %v509, %v109
    %v532 = vmul.f32 %v511, %v110
    %v533 = vmul.f32 %v513, %v111
    %v534 = vmul.f32 %v515, %v112
    %v535 = vmul.f32 %v517, %v113
    %v536 = vmul.f32 %v519, %v114
    %v537 = vmul.f32 %v521, %v115
    %v538 = vadd.f32 %v522, %v523
    %v539 = vadd.f32 %v538, %v524
    %v540 = vadd.f32 %v539, %v525
    %v541 = vadd.f32 %v540, %v526
    %v542 = vadd.f32 %v541, %v527
    %v543 = vadd.f32 %v542, %v528
    %v544 = vadd.f32 %v543, %v529
    %v545 = vadd.f32 %v544, %v530
    %v546 = vadd.f32 %v545, %v531
    %v547 = vadd.f32 %v546, %v532
    %v548 = vadd.f32 %v547, %v533
    %v549 = vadd.f32 %v548, %v534
    %v550 = vadd.f32 %v549, %v535
    %v551 = vadd.f32 %v550, %v536
    %v552 = vadd.f32 %v551, %v537
    %v553 = vrot.slane %v552, 4
    %v554 = vadd.f32 %v552, %v553
    %v555 = vrot.slane %v554, 2
    %v556 = vadd.f32 %v554, %v555
    %v557 = vrot.slane %v556, 1
    %v558 = vadd.f32 %v556, %v557
    %v559 = vld [vmem:[#allocation3] sm:$0x1]
    %v560 = vsub.f32 %v466, %v467
    %v561 = vmul.f32 %v560, 1.442695
    %v562 = vpow.pop %v561
    %v563 = vmul.f32 %v559, %v562
    %v564 = vadd.f32 %v563, %v558
    %565 = vst [vmem:[#allocation3] sm:$0x1] %v564
    %566 = vst [vmem:[#allocation2] sm:$0x1] %v467
    // Predicated region
    $region14: #{tpu_custom_call.1} parent=1 // pred_check
      %p567 = pneg %p23
    $region15: #{tpu_custom_call.1} parent=1 // pred_check_branch
      %569 = sbr.rel (%p567) target = $region17
    $region16: #{tpu_custom_call.1} parent=1 // pred_region
      %v570 = vld [vmem:[#allocation2] sm:$0x1]
      %v571 = vld [vmem:[#allocation3] sm:$0x1]
      %v572 = vlog2.pop %v571
      %v573 = vmul.f32 %v572, 0.6931472
      %v574 = vadd.f32 %v570, %v573
      %vm575 = vcmp.lt.s32.totalorder %v66, 8
      %v576 = vsel %vm575, %v574, 0.0
      %vm577 = vcmask 1040384
      %v578 = vsel %vm577, %v576, 0.0
      %579 = vadd.xlane.f32.xlu0 %v578
      %v580 = vpop.xlane.xlu0 %579
      %v581 = vld [vmem:[#allocation4] sm:$0x1]
      %v582 = vadd.f32 %v581, %v580
      %v583 = vmul.f32 %v582, 0.125
      %584 = vst.msk [vmem:[#allocation8] sm:$0x1] %vm443, %v583
    $region17: #{tpu_custom_call.1} parent=1 // pred_fallthru
      _
    // Predicated region
    $region18: #{tpu_custom_call.1} parent=1 // pred_check
      _
    $region19: #{tpu_custom_call.1} parent=1 // pred_check_branch
      %586 = sbr.rel (0) target = $region21
    $region20: #{tpu_custom_call.1} parent=1 // pred_region
      %s588 = ssub.s32 16, 16
      %589 = vsyncadd [#allocation7], %s588
      %s591 = sshll.u32 [#allocation8], 4
      %s592 = int_to_ptr.vmem [resolvable:$true] %s591
      %594 = dma.vmem_to_hbm [thread:$0]  %s592, 16, %s1, [#allocation7]
    $region21: #{tpu_custom_call.1} parent=1 // pred_fallthru
      _
    // Predicated region
    $region22: #{tpu_custom_call.1} parent=1 // pred_check
      _
    $region23: #{tpu_custom_call.1} parent=1 // pred_check_branch
      %596 = sbr.rel (0) target = $region25
    $region24: #{tpu_custom_call.1} parent=1 // pred_region
      %597 = dma.done [#allocation7], 16
    $region25: #{tpu_custom_call.1} parent=1 // pred_fallthru
      _
    %598 = vsyncpa [#allocation6], 1
    %599 = vsyncpa [#allocation7], 1

</llo_original>
